<compile_context>
chip_gen: v7x
topology: tpu7x:2x2x1
jax: 0.10.0
libtpu: 0.0.40
codegen_flags: <defaults>
</compile_context>

<pallas_src>
import functools

import jax
import jax.numpy as jnp
from jax import lax
from jax.experimental import pallas as pl
from jax.experimental.pallas import tpu as pltpu


_MAX_FOLD_CHUNKS = 64  # cap on the unrolled lane-fold loop in Stage A


def _sigmoid(z):
    # sigmoid(z) == 0.5 * tanh(0.5 * z) + 0.5 : single EUP op, no full-precision divide.
    return jnp.tanh(z * 0.5) * 0.5 + 0.5


def _pool_mlp_kernel(x_ref, w1t_ref, w2_ref, a_ref, acc_ref, *,
                     inv_hw, hw, t_hw, ragged):
    """Stage A: accumulate channel sums over HW tiles, finalize a = fc2(relu(fc1(avg)))."""
    t = pl.program_id(1)

    @pl.when(t == 0)
    def _():
        acc_ref[...] = jnp.zeros_like(acc_ref)

    x = x_ref[...].astype(jnp.float32)                       # (C, t_hw)
    if ragged:
        # The last HW tile reads past HW: zero the out-of-bounds lanes so the
        # channel sums stay exact (no wrapper-side jnp.pad needed).
        valid = hw - t * t_hw                                 # >= t_hw except last tile
        lane = lax.broadcasted_iota(jnp.int32, x.shape, 1)
        x = jnp.where(lane < valid, x, 0.0)

    # Lane-dense VALU accumulation: fold the tile into a (C, 128) partial-sum
    # scratch; the single cross-lane (XLU) reduce happens only at finalize.
    n_chunks = t_hw // 128
    part = x[:, 0:128]
    for k in range(1, n_chunks):
        part = part + x[:, k * 128:(k + 1) * 128]
    acc_ref[...] += part

    @pl.when(t == pl.num_programs(1) - 1)
    def _():
        # Exact mean: divide by the true H*W (masked lanes contributed zeros).
        avg = jnp.sum(acc_ref[...], axis=-1, keepdims=True) * inv_hw     # (C, 1)
        # fc1 (no bias): w1 passed pre-transposed as (C, hidden) -> no in-kernel transpose.
        h = jnp.maximum(jnp.sum(w1t_ref[...] * avg, axis=0, keepdims=True), 0.0)  # (1, hidden)
        # fc2 (no bias): a[c] = sum_j w2[c, j] * h[j]
        a = jnp.sum(w2_ref[...] * h, axis=-1, keepdims=True)             # (C, 1)
        a_ref[...] = a.astype(a_ref.dtype)


def _apply_kernel(x_ref, a_ref, o_ref, *, compute_dtype):
    """Stage B: out = sigmoid(x * a), a broadcast over the spatial (lane) axis."""
    x = x_ref[...].astype(compute_dtype)
    a = a_ref[...].astype(compute_dtype)
    o_ref[...] = _sigmoid(x * a).astype(o_ref.dtype)


def _fused_kernel(x_ref, w1t_ref, w2_ref, o_ref, *, inv_hw, compute_dtype):
    """Single pass when one (C, HW) image fits VMEM: pool + MLP + sigmoid(x*a)."""
    xv = x_ref[...]                                           # (C, HW)
    xf = xv.astype(jnp.float32)
    avg = jnp.sum(xf, axis=-1, keepdims=True) * inv_hw        # (C, 1) exact block, no mask
    h = jnp.maximum(jnp.sum(w1t_ref[...] * avg, axis=0, keepdims=True), 0.0)
    a = jnp.sum(w2_ref[...] * h, axis=-1, keepdims=True)      # (C, 1)
    z = xv.astype(compute_dtype) * a.astype(compute_dtype)
    o_ref[...] = _sigmoid(z).astype(o_ref.dtype)


def _vmem_cap_bytes():
    """Generation-aware VMEM budget (headroom below physical capacity)."""
    try:
        cap = int(pltpu.get_tpu_info().vmem_capacity_bytes)
    except Exception:
        cap = 64 << 20   # conservative default (v7x per-core VMEM)
    return int(max(32 << 20, min(cap - (8 << 20), 100 << 20)))


def _compiler_params(vmem_est, semantics, cap):
    vmem = int(min(cap, max(32 << 20, vmem_est)))
    return pltpu.CompilerParams(dimension_semantics=semantics,
                                vmem_limit_bytes=vmem)


def _choose_hw_tile(C, HW, hw_tile=None, itemsize=4, target_bytes=4 << 20):
    """Pick a lane-dense HW tile (~target_bytes of x per block, multiple of 128)."""
    if hw_tile is not None:
        return max(128, (int(hw_tile) // 128) * 128)
    lanes = max(128, (target_bytes // (itemsize * C)) // 128 * 128)
    lanes = min(lanes, _MAX_FOLD_CHUNKS * 128)          # bound the unrolled lane fold
    hw_ceil = pl.cdiv(HW, 128) * 128
    return int(min(lanes, hw_ceil))


def channel_attention(x_nchw, w1, w2, *, hw_tile=None):
    """x_nchw: (B, C, H, W); w1: (C//16, C) fc1 weight; w2: (C, C//16) fc2 weight."""
    B, C, H, W = x_nchw.shape
    HW = H * W
    hidden, c_in = w1.shape
    assert c_in == C and w2.shape == (C, hidden)

    itemsize = jnp.dtype(x_nchw.dtype).itemsize
    compute_dtype = jnp.bfloat16 if x_nchw.dtype == jnp.bfloat16 else jnp.float32
    cap = _vmem_cap_bytes()

    x = x_nchw.reshape(B, C, HW)        # contiguous reshape: free
    w1t = jnp.transpose(w1)             # (C, hidden): transpose hoisted out of the kernel

    io_bytes = C * HW * itemsize
    fused_est = 4 * io_bytes + 4 * C * HW * 4 + (4 << 20)

    if hw_tile is None and fused_est <= cap:
        # --- Fused single pass: read x from HBM once, write out once.
        out = pl.pallas_call(
            functools.partial(_fused_kernel, inv_hw=float(1.0 / HW),
                              compute_dtype=compute_dtype),
            out_shape=jax.ShapeDtypeStruct((B, C, HW), x_nchw.dtype),
            grid_spec=pltpu.PrefetchScalarGridSpec(
                num_scalar_prefetch=0,
                grid=(B,),
                in_specs=[
                    pl.BlockSpec((pl.Squeezed(), C, HW), lambda b: (b, 0, 0)),
                    pl.BlockSpec((C, hidden), lambda b: (0, 0)),
                    pl.BlockSpec((C, hidden), lambda b: (0, 0)),
                ],
                out_specs=pl.BlockSpec((pl.Squeezed(), C, HW), lambda b: (b, 0, 0)),
            ),
            compiler_params=_compiler_params(fused_est, ("parallel",), cap),
        )(x, w1t, w2)
        return out.reshape(B, C, H, W)

    # --- Two-stage path (x read twice): Stage A pool+MLP, Stage B apply.
    t_hw = _choose_hw_tile(C, HW, hw_tile, itemsize)
    n_hw = pl.cdiv(HW, t_hw)
    ragged = (HW % t_hw) != 0
    block_bytes = C * t_hw * itemsize

    # TODO(synk): on v7x with B<=2, split Stage A's HW reduction across a leading
    # size-2 parallel axis so both TensorCores share the Stage A read of x.
    a = pl.pallas_call(
        functools.partial(_pool_mlp_kernel, inv_hw=float(1.0 / HW),
                          hw=HW, t_hw=t_hw, ragged=ragged),
        out_shape=jax.ShapeDtypeStruct((B, C, 1), jnp.float32),
        grid_spec=pltpu.PrefetchScalarGridSpec(
            num_scalar_prefetch=0,
            grid=(B, n_hw),
            in_specs=[
                pl.BlockSpec((pl.Squeezed(), C, t_hw), lambda b, t: (b, 0, t)),
                pl.BlockSpec((C, hidden), lambda b, t: (0, 0)),
                pl.BlockSpec((C, hidden), lambda b, t: (0, 0)),
            ],
            out_specs=pl.BlockSpec((pl.Squeezed(), C, 1), lambda b, t: (b, 0, 0)),
            scratch_shapes=[pltpu.VMEM((C, 128), jnp.float32)],
        ),
        compiler_params=_compiler_params(3 * block_bytes + (2 << 20),
                                         ("parallel", "arbitrary"), cap),
    )(x, w1t, w2)

    out = pl.pallas_call(
        functools.partial(_apply_kernel, compute_dtype=compute_dtype),
        out_shape=jax.ShapeDtypeStruct((B, C, HW), x_nchw.dtype),
        grid_spec=pltpu.PrefetchScalarGridSpec(
            num_scalar_prefetch=0,
            grid=(B, n_hw),
            in_specs=[
                pl.BlockSpec((pl.Squeezed(), C, t_hw), lambda b, t: (b, 0, t)),
                pl.BlockSpec((pl.Squeezed(), C, 1), lambda b, t: (b, 0, 0)),
            ],
            out_specs=pl.BlockSpec((pl.Squeezed(), C, t_hw), lambda b, t: (b, 0, t)),
        ),
        compiler_params=_compiler_params(5 * block_bytes + (2 << 20),
                                         ("parallel", "parallel"), cap),
    )(x, a)

    return out.reshape(B, C, H, W)


def channel_attention_ref(x, w1, w2):
    # Pure-JAX reference matching the PyTorch module: sigmoid(x * fc2(relu(fc1(avg)))).
    avg = jnp.mean(x, axis=(2, 3), keepdims=True)                 # (B, C, 1, 1)
    h = jnp.maximum(jnp.einsum("oc,bcij->boij", w1, avg), 0.0)    # fc1 + relu
    a = jnp.einsum("co,boij->bcij", w2, h)                        # fc2
    return jax.nn.sigmoid(x * a)


if __name__ == "__main__":
    key = jax.random.PRNGKey(0)

    cases = [
        dict(B=2, C=32, H=16, W=16, hw_tile=None),    # fused single pass
        dict(B=1, C=32, H=10, W=10, hw_tile=None),    # fused, ragged HW (not mult of 128)
        dict(B=1, C=32, H=18, W=18, hw_tile=128),     # two-stage, multi-tile, ragged last tile
        dict(B=1, C=128, H=20, W=20, hw_tile=256),    # two-stage, multi-chunk lane fold, ragged
    ]

    for i, cfg in enumerate(cases):
        B, C, H, W = cfg["B"], cfg["C"], cfg["H"], cfg["W"]
        hidden = C // 16
        kx, k1, k2, key = jax.random.split(key, 4)
        x = jax.random.normal(kx, (B, C, H, W), dtype=jnp.float32)
        # Weight shapes from nn.Conv2d(C, C//16, 1, bias=False) / nn.Conv2d(C//16, C, 1, bias=False).
        w1 = 0.1 * jax.random.normal(k1, (hidden, C), dtype=jnp.float32)
        w2 = 0.1 * jax.random.normal(k2, (C, hidden), dtype=jnp.float32)

        out = channel_attention(x, w1, w2, hw_tile=cfg["hw_tile"])
        out = jax.block_until_ready(out)

        ref = channel_attention_ref(x, w1, w2)
        assert out.shape == (B, C, H, W)
        assert jnp.allclose(out, ref, atol=2e-5, rtol=2e-5), f"mismatch vs reference (case {i})"

    print("KERNEL_OK")
</pallas_src>

<mosaic_0001>
module attributes {stable_mosaic.version = 11 : i64} {
  func.func @_fused_kernel(%arg0: i32, %arg1: memref<1x32x256xf32, #tpu.memory_space<vmem>>, %arg2: memref<32x2xf32, #tpu.memory_space<vmem>>, %arg3: memref<32x2xf32, #tpu.memory_space<vmem>>, %arg4: memref<1x32x256xf32, #tpu.memory_space<vmem>>) attributes {dimension_semantics = [#tpu.dimension_semantics<parallel>], iteration_bounds = array<i64: 2>, scalar_prefetch = 0 : i64, scratch_operands = 0 : i64, tpu.core_type = #tpu.core_type<tc>, window_params = [{transform_indices = @transform_0, window_bounds = array<i64: 1, 32, 256>}, {pipeline_mode = #tpu.pipeline_mode<synchronous>, transform_indices = @transform_1, window_bounds = array<i64: 32, 2>}, {pipeline_mode = #tpu.pipeline_mode<synchronous>, transform_indices = @transform_2, window_bounds = array<i64: 32, 2>}, {transform_indices = @transform_3, window_bounds = array<i64: 1, 32, 256>}]} {
    %c0 = arith.constant 0 : index
    %c0_0 = arith.constant 0 : index
    %c0_1 = arith.constant 0 : index
    %0 = vector.load %arg1[%c0, %c0_0, %c0_1] : memref<1x32x256xf32, #tpu.memory_space<vmem>>, vector<1x32x256xf32>
    %1 = vector.shape_cast %0 : vector<1x32x256xf32> to vector<32x256xf32>
    %cst = arith.constant dense<0.000000e+00> : vector<32xf32>
    %2 = vector.multi_reduction <add>, %1, %cst [1] : vector<32x256xf32> to vector<32xf32>
    %3 = vector.shape_cast %2 : vector<32xf32> to vector<32x1xf32>
    %cst_2 = arith.constant 3.906250e-03 : f32
    %4 = vector.broadcast %cst_2 : f32 to vector<32x1xf32>
    %5 = arith.mulf %3, %4 : vector<32x1xf32>
    %c0_3 = arith.constant 0 : index
    %c0_4 = arith.constant 0 : index
    %6 = vector.load %arg2[%c0_3, %c0_4] : memref<32x2xf32, #tpu.memory_space<vmem>>, vector<32x2xf32>
    %7 = vector.broadcast %5 : vector<32x1xf32> to vector<32x2xf32>
    %8 = arith.mulf %6, %7 : vector<32x2xf32>
    %cst_5 = arith.constant dense<0.000000e+00> : vector<2xf32>
    %9 = vector.multi_reduction <add>, %8, %cst_5 [0] : vector<32x2xf32> to vector<2xf32>
    %10 = vector.shape_cast %9 : vector<2xf32> to vector<1x2xf32>
    %cst_6 = arith.constant 0.000000e+00 : f32
    %11 = vector.broadcast %cst_6 : f32 to vector<1x2xf32>
    %12 = arith.maximumf %10, %11 : vector<1x2xf32>
    %c0_7 = arith.constant 0 : index
    %c0_8 = arith.constant 0 : index
    %13 = vector.load %arg3[%c0_7, %c0_8] : memref<32x2xf32, #tpu.memory_space<vmem>>, vector<32x2xf32>
    %14 = vector.broadcast %12 : vector<1x2xf32> to vector<32x2xf32>
    %15 = arith.mulf %13, %14 : vector<32x2xf32>
    %cst_9 = arith.constant dense<0.000000e+00> : vector<32xf32>
    %16 = vector.multi_reduction <add>, %15, %cst_9 [1] : vector<32x2xf32> to vector<32xf32>
    %17 = vector.shape_cast %16 : vector<32xf32> to vector<32x1xf32>
    %18 = vector.broadcast %17 : vector<32x1xf32> to vector<32x256xf32>
    %19 = arith.mulf %1, %18 : vector<32x256xf32>
    %cst_10 = arith.constant 5.000000e-01 : f32
    %20 = vector.broadcast %cst_10 : f32 to vector<32x256xf32>
    %21 = arith.mulf %19, %20 : vector<32x256xf32>
    %22 = math.tanh %21 : vector<32x256xf32>
    %cst_11 = arith.constant 5.000000e-01 : f32
    %23 = vector.broadcast %cst_11 : f32 to vector<32x256xf32>
    %24 = arith.mulf %22, %23 : vector<32x256xf32>
    %cst_12 = arith.constant 5.000000e-01 : f32
    %25 = vector.broadcast %cst_12 : f32 to vector<32x256xf32>
    %26 = arith.addf %24, %25 : vector<32x256xf32>
    %c0_13 = arith.constant 0 : index
    %c0_14 = arith.constant 0 : index
    %c0_15 = arith.constant 0 : index
    %27 = vector.load %arg4[%c0_13, %c0_14, %c0_15] : memref<1x32x256xf32, #tpu.memory_space<vmem>>, vector<1x32x256xf32>
    %28 = vector.shape_cast %27 : vector<1x32x256xf32> to vector<32x256xf32>
    %29 = vector.shape_cast %26 : vector<32x256xf32> to vector<1x32x256xf32>
    tpu.vector_store %arg4[%c0_13, %c0_14, %c0_15], %29 {strides = array<i32>} : memref<1x32x256xf32, #tpu.memory_space<vmem>>, vector<1x32x256xf32>,
    return
  }
  func.func @transform_0(%arg0: i32) -> (i32, i32, i32) {
    %c0_i32 = arith.constant 0 : i32
    %c0_i32_0 = arith.constant 0 : i32
    %c0_i32_1 = arith.constant 0 : i32
    return %arg0, %c0_i32, %c0_i32_0 : i32, i32, i32
  }
  func.func @transform_1(%arg0: i32) -> (i32, i32) {
    %c0_i32 = arith.constant 0 : i32
    %c0_i32_0 = arith.constant 0 : i32
    %c0_i32_1 = arith.constant 0 : i32
    return %c0_i32, %c0_i32_0 : i32, i32
  }
  func.func @transform_2(%arg0: i32) -> (i32, i32) {
    %c0_i32 = arith.constant 0 : i32
    %c0_i32_0 = arith.constant 0 : i32
    %c0_i32_1 = arith.constant 0 : i32
    return %c0_i32, %c0_i32_0 : i32, i32
  }
  func.func @transform_3(%arg0: i32) -> (i32, i32, i32) {
    %c0_i32 = arith.constant 0 : i32
    %c0_i32_0 = arith.constant 0 : i32
    %c0_i32_1 = arith.constant 0 : i32
    return %arg0, %c0_i32, %c0_i32_0 : i32, i32, i32
  }
}

</mosaic_0001>

<llo_original>
// kernel: tpu_custom_call.1
$region0: #{tpu_custom_call.1}
  #allocation0 [shape = 'u32[]', space=smem, size = 0x4, offset = 0x4, fixed_abs, tag = 'smem constant byte address 0x4 - core index']
  #allocation1 [shape = 'u32[144,128]{1,0:T(1,128)}', space=vmem, size = 0x12000, scoped, tag = 'internal scratch']
  %s0 = inlined_call_operand.hbm [shape: f32[2,32,256], index: 0, kind: input, shape index: {}]
  %s1 = inlined_call_operand.vmem [shape: f32[32,2], index: 1, kind: input, shape index: {}]
  %s2 = inlined_call_operand.vmem [shape: f32[32,2], index: 2, kind: input, shape index: {}]
  %s3 = inlined_call_operand.hbm [shape: f32[2,32,256], index: 3, kind: output, shape index: {}]
  %s4 = sld [smem:[#allocation0]]
  $region49: #{tpu_custom_call.1} parent=0
    _
  %s6 = ssub.s32 1, %s4
  %s7 = scalar_select 0, %s6, %s4
  $region1: #{tpu_custom_call.1} parent=0
    #allocation2 [shape = 'u8[65536]{0}', space=vmem, size = 0x10000, scoped, tag = 'input window, operand 0']
    #allocation3 [shape = 's32[2]{0}', space=sflag, size = 0x8, scoped, tag = 'scoped memory for tpu_custom_call.1']
    #allocation4 [shape = 's32[2]{0}', space=sflag, size = 0x8, scoped, tag = 'scoped memory for tpu_custom_call.1']
    #allocation5 [shape = 'u8[65536]{0}', space=vmem, size = 0x10000, scoped, tag = 'output window, operand 0']
    %8 = vsyncpa [#allocation3], 0
    %s9 = scalar_lea.sflag [#allocation3], 1
    %10 = vsyncpa %s9, 0
    %11 = vsyncpa [#allocation4], 0
    %s12 = scalar_lea.sflag [#allocation4], 1
    %13 = vsyncpa %s12, 0
    loop: start=0, step=1, limit=4
    $region2: #{tpu_custom_call.1} parent=1 // loop_pre_header
      _
    $region3: #{tpu_custom_call.1} parent=1 // loop_header
      %s15 = sphi 0, %s19
      %p16 = scmp.ge.s32.totalorder %s15, 4
      %s25 = sphi 0, %s27
      %s28 = sphi 0, %s25
      %s29 = sphi 0, %s28
      %s45 = sphi 0, %s29
      %s49 = sphi 0, %s49
      %s51 = sphi 0, %s49
      %s52 = sphi 0, %s51
      %s66 = sphi 0, %s52
      %s70 = sphi 0, %s70
      %s72 = sphi 0, %s70
      %s73 = sphi 0, %s72
      %s87 = sphi 0, %s73
      %s93 = sphi 0, %s95
      %s96 = sphi 0, %s93
      %s97 = sphi 0, %s96
      %s113 = sphi 0, %s97
    $region4: #{tpu_custom_call.1} parent=1 // loop_header_branch
      %18 = sbr.rel (%p16) target = $region8
    $region5: #{tpu_custom_call.1} parent=1 // loop_body
      %s20 = ssub.s32 %s15, 1
      %s21 = ssub.s32 %s15, 2
      %s22 = sadd.s32 %s15, 1
      %s23 = ssub.s32 %s15, %s22
      %p24 = scmp.eq.s32.totalorder %s23, 0
      %s26 = sadd.s32 %s25, 1
      %s27 = scalar_select %p24, %s25, %s26
      %p30 = pneg %p24
      %p31 = scmp.eq.s32.totalorder %s15, 1
      %p32 = por %p30, %p31
      %p33 = scmp.ne.s32.totalorder %s25, %s28
      %p34 = scmp.eq.s32.totalorder %s15, 0
      %p35 = por %p33, %p34
      %p36 = scmp.ne.s32.totalorder %s25, %s28
      %p37 = scmp.eq.s32.totalorder %s20, 1
      %p38 = por %p36, %p37
      %p39 = scmp.ne.s32.totalorder %s28, %s29
      %p40 = scmp.eq.s32.totalorder %s20, 0
      %p41 = por %p39, %p40
      %p42 = scmp.ne.s32.totalorder %s28, %s29
      %p43 = scmp.eq.s32.totalorder %s21, 1
      %p44 = por %p42, %p43
      %p46 = scmp.ne.s32.totalorder %s29, %s45
      %p47 = scmp.eq.s32.totalorder %s21, 0
      %p48 = por %p46, %p47
      %s50 = sadd.s32 %s49, 1
      %p53 = scmp.eq.s32.totalorder %s15, 1
      %p54 = scmp.ne.s32.totalorder %s49, %s51
      %p55 = scmp.eq.s32.totalorder %s15, 0
      %p56 = por %p54, %p55
      %p57 = scmp.ne.s32.totalorder %s49, %s51
      %p58 = scmp.eq.s32.totalorder %s20, 1
      %p59 = por %p57, %p58
      %p60 = scmp.ne.s32.totalorder %s51, %s52
      %p61 = scmp.eq.s32.totalorder %s20, 0
      %p62 = por %p60, %p61
      %p63 = scmp.ne.s32.totalorder %s51, %s52
      %p64 = scmp.eq.s32.totalorder %s21, 1
      %p65 = por %p63, %p64
      %p67 = scmp.ne.s32.totalorder %s52, %s66
      %p68 = scmp.eq.s32.totalorder %s21, 0
      %p69 = por %p67, %p68
      %s71 = sadd.s32 %s70, 1
      %p74 = scmp.eq.s32.totalorder %s15, 1
      %p75 = scmp.ne.s32.totalorder %s70, %s72
      %p76 = scmp.eq.s32.totalorder %s15, 0
      %p77 = por %p75, %p76
      %p78 = scmp.ne.s32.totalorder %s70, %s72
      %p79 = scmp.eq.s32.totalorder %s20, 1
      %p80 = por %p78, %p79
      %p81 = scmp.ne.s32.totalorder %s72, %s73
      %p82 = scmp.eq.s32.totalorder %s20, 0
      %p83 = por %p81, %p82
      %p84 = scmp.ne.s32.totalorder %s72, %s73
      %p85 = scmp.eq.s32.totalorder %s21, 1
      %p86 = por %p84, %p85
      %p88 = scmp.ne.s32.totalorder %s73, %s87
      %p89 = scmp.eq.s32.totalorder %s21, 0
      %p90 = por %p88, %p89
      %s91 = ssub.s32 %s15, %s22
      %p92 = scmp.eq.s32.totalorder %s91, 0
      %s94 = sadd.s32 %s93, 1
      %s95 = scalar_select %p92, %s93, %s94
      %p98 = pneg %p92
      %p99 = scmp.eq.s32.totalorder %s15, 1
      %p100 = por %p98, %p99
      %p101 = scmp.ne.s32.totalorder %s93, %s96
      %p102 = scmp.eq.s32.totalorder %s15, 0
      %p103 = por %p101, %p102
      %p104 = scmp.ne.s32.totalorder %s93, %s96
      %p105 = scmp.eq.s32.totalorder %s20, 1
      %p106 = por %p104, %p105
      %p107 = scmp.ne.s32.totalorder %s96, %s97
      %p108 = scmp.eq.s32.totalorder %s20, 0
      %p109 = por %p107, %p108
      %p110 = scmp.ne.s32.totalorder %s96, %s97
      %p111 = scmp.eq.s32.totalorder %s21, 1
      %p112 = por %p110, %p111
      %p114 = scmp.ne.s32.totalorder %s97, %s113
      %p115 = scmp.eq.s32.totalorder %s21, 0
      %p116 = por %p114, %p115
      %p117 = scmp.le.s32.totalorder 1, %s15
      %p118 = scmp.lt.s32.totalorder %s15, 3
      %p119 = pnand %p117, %p118
      %p120 = pneg %p119
      // Predicated region
      $region9: #{tpu_custom_call.1} parent=5 // pred_check
        _
      $region10: #{tpu_custom_call.1} parent=5 // pred_check_branch
        %122 = sbr.rel (%p119) target = $region12
      $region11: #{tpu_custom_call.1} parent=5 // pred_region
        %s123 = ssub.s32 %s15, 1
        // Predicated region
        $region13: #{tpu_custom_call.1} parent=11 // pred_check
          %p124 = pneg %p62
        $region14: #{tpu_custom_call.1} parent=11 // pred_check_branch
          %126 = sbr.rel (%p124) target = $region16
        $region15: #{tpu_custom_call.1} parent=11 // pred_region
          _
        $region16: #{tpu_custom_call.1} parent=11 // pred_fallthru
          _
        // Predicated region
        $region17: #{tpu_custom_call.1} parent=11 // pred_check
          %p127 = pneg %p83
        $region18: #{tpu_custom_call.1} parent=11 // pred_check_branch
          %129 = sbr.rel (%p127) target = $region20
        $region19: #{tpu_custom_call.1} parent=11 // pred_region
          _
        $region20: #{tpu_custom_call.1} parent=11 // pred_fallthru
          _
      $region12: #{tpu_custom_call.1} parent=5 // pred_fallthru
        _
      %p130 = scmp.lt.s32.totalorder %s15, 2
      // Predicated region
      $region21: #{tpu_custom_call.1} parent=5 // pred_check
        %p131 = pneg %p130
      $region22: #{tpu_custom_call.1} parent=5 // pred_check_branch
        %133 = sbr.rel (%p131) target = $region24
      $region23: #{tpu_custom_call.1} parent=5 // pred_region
        // Predicated region
        $region25: #{tpu_custom_call.1} parent=23 // pred_check
          %p134 = pneg %p35
        $region26: #{tpu_custom_call.1} parent=23 // pred_check_branch
          %136 = sbr.rel (%p134) target = $region28
        $region27: #{tpu_custom_call.1} parent=23 // pred_region
          %s137 = sand.u32 %s25, 1
          %s138 = scalar_lea.sflag [#allocation3], %s137
          %s139 = sand.u32 %s25, 1
          %s140 = smul.addr %s139, 64
          %s141 = scalar_lea.vmem [#allocation2], %s140
          %s143 = ssub.s32 1024, 1024
          %144 = vsyncadd %s138, %s143
          %s145 = smul.addr %s15, 8
          %s146 = smul.addr %s145, 128
          %s147 = scalar_lea.hbm %s0, %s146
          %s148 = sshll.u32 %s141, 4
          %s149 = int_to_ptr.vmem [resolvable:$true] %s148
          %154 = dma.hbm_to_vmem [thread:$0]  %s147, 1024, %s149, %s138, 256, 256, 16
        $region28: #{tpu_custom_call.1} parent=23 // pred_fallthru
          _
      $region24: #{tpu_custom_call.1} parent=5 // pred_fallthru
        _
      %p155 = scmp.le.s32.totalorder 1, %s15
      %p156 = scmp.lt.s32.totalorder %s15, 3
      %p157 = pnand %p155, %p156
      %p158 = pneg %p157
      // Predicated region
      $region29: #{tpu_custom_call.1} parent=5 // pred_check
        _
      $region30: #{tpu_custom_call.1} parent=5 // pred_check_branch
        %160 = sbr.rel (%p157) target = $region32
      $region31: #{tpu_custom_call.1} parent=5 // pred_region
        %s161 = ssub.s32 %s15, 1
        %s162 = sand.u32 %s28, 1
        %s163 = scalar_lea.sflag [#allocation3], %s162
        %s164 = sand.u32 %s28, 1
        %s165 = smul.addr %s164, 64
        %s166 = scalar_lea.vmem [#allocation2], %s165
        // Predicated region
        $region33: #{tpu_custom_call.1} parent=31 // pred_check
          %p167 = pneg %p41
        $region34: #{tpu_custom_call.1} parent=31 // pred_check_branch
          %169 = sbr.rel (%p167) target = $region36
        $region35: #{tpu_custom_call.1} parent=31 // pred_region
          %170 = dma.done %s163, 1024
        $region36: #{tpu_custom_call.1} parent=31 // pred_fallthru
          _
        %s171 = sand.u32 %s28, 1
        %s172 = scalar_lea.sflag [#allocation3], %s171
        %s173 = sand.u32 %s28, 1
        %s174 = smul.addr %s173, 64
        %s175 = scalar_lea.vmem [#allocation2], %s174
        %p176 = pneg %p41
        %p177 = pneg %p38
        %p178 = pneg %p62
        %p179 = pneg %p59
        %p180 = pneg %p83
        %p181 = pneg %p80
        %p182 = pneg %p109
        %p183 = pneg %p106
        %s184 = sand.u32 %s96, 1
        %s185 = scalar_lea.sflag [#allocation4], %s184
        %s186 = sand.u32 %s96, 1
        %s187 = smul.addr %s186, 64
        %s188 = scalar_lea.vmem [#allocation5], %s187
        %v189 = vld [vmem:[%s166] sm:$0xff]
        %v190 = vld [vmem:[%s166 + $0x8] sm:$0xff]
        %v191 = vld [vmem:[%s166 + $0x10] sm:$0xff]
        %v192 = vld [vmem:[%s166 + $0x18] sm:$0xff]
        %v193 = vld [vmem:[%s166 + $0x20] sm:$0xff]
        %v194 = vld [vmem:[%s166 + $0x28] sm:$0xff]
        %v195 = vld [vmem:[%s166 + $0x30] sm:$0xff]
        %v196 = vld [vmem:[%s166 + $0x38] sm:$0xff]
        %v197 = vadd.f32 %v189, %v190
        %198 = vadd.xlane.f32.xlu0 %v197
        %v199 = vpop.xlane.xlu0 %198
        %v200 = vadd.f32 %v191, %v192
        %201 = vadd.xlane.f32.xlu0 %v200
        %v202 = vpop.xlane.xlu0 %201
        %v203 = vadd.f32 %v193, %v194
        %204 = vadd.xlane.f32.xlu0 %v203
        %v205 = vpop.xlane.xlu0 %204
        %v206 = vadd.f32 %v195, %v196
        %207 = vadd.xlane.f32.xlu0 %v206
        %v208 = vpop.xlane.xlu0 %207
        %v209 = vmul.f32 %v199, 0.00390625
        %v210 = vmul.f32 %v202, 0.00390625
        %v211 = vmul.f32 %v205, 0.00390625
        %v212 = vmul.f32 %v208, 0.00390625
        %v213 = vld [vmem:[%s1] sm:$0xff]
        %v214 = vld [vmem:[%s1 + $0x8] sm:$0xff]
        %v215 = vld [vmem:[%s1 + $0x10] sm:$0xff]
        %v216 = vld [vmem:[%s1 + $0x18] sm:$0xff]
        %v217 = vmul.f32 %v213, %v209
        %v218 = vmul.f32 %v214, %v210
        %v219 = vmul.f32 %v215, %v211
        %v220 = vmul.f32 %v216, %v212
        %vm221 = vcmask 15360
        %v222 = vsel %vm221, %v217, 0.0
        %v223 = vsel %vm221, %v218, 0.0
        %v224 = vadd.f32 %v222, %v223
        %v225 = vsel %vm221, %v219, 0.0
        %v226 = vadd.f32 %v224, %v225
        %v227 = vsel %vm221, %v220, 0.0
        %v228 = vadd.f32 %v226, %v227
        %v229 = vrot.slane %v228, 4
        %v230 = vadd.f32 %v228, %v229
        %v231 = vrot.slane %v230, 2
        %v232 = vadd.f32 %v230, %v231
        %v233 = vrot.slane %v232, 1
        %v234 = vadd.f32 %v232, %v233
        %v235 = vmax.f32 %v234, 0.0
        %v236 = vld [vmem:[%s2] sm:$0xff]
        %v237 = vld [vmem:[%s2 + $0x8] sm:$0xff]
        %v238 = vld [vmem:[%s2 + $0x10] sm:$0xff]
        %v239 = vld [vmem:[%s2 + $0x18] sm:$0xff]
        %v240 = vmul.f32 %v236, %v235
        %v241 = vmul.f32 %v237, %v235
        %v242 = vmul.f32 %v238, %v235
        %v243 = vmul.f32 %v239, %v235
        %v244 = vsel %vm221, %v240, 0.0
        %245 = vadd.xlane.f32.xlu0 %v244
        %v246 = vpop.xlane.xlu0 %245
        %v247 = vsel %vm221, %v241, 0.0
        %248 = vadd.xlane.f32.xlu0 %v247
        %v249 = vpop.xlane.xlu0 %248
        %v250 = vsel %vm221, %v242, 0.0
        %251 = vadd.xlane.f32.xlu0 %v250
        %v252 = vpop.xlane.xlu0 %251
        %v253 = vsel %vm221, %v243, 0.0
        %254 = vadd.xlane.f32.xlu0 %v253
        %v255 = vpop.xlane.xlu0 %254
        %v256 = vmul.f32 %v189, %v246
        %v257 = vmul.f32 %v190, %v246
        %v258 = vmul.f32 %v191, %v249
        %v259 = vmul.f32 %v192, %v249
        %v260 = vmul.f32 %v193, %v252
        %v261 = vmul.f32 %v194, %v252
        %v262 = vmul.f32 %v195, %v255
        %v263 = vmul.f32 %v196, %v255
        %v264 = vmul.f32 %v256, 0.5
        %v265 = vmul.f32 %v257, 0.5
        %v266 = vmul.f32 %v258, 0.5
        %v267 = vmul.f32 %v259, 0.5
        %v268 = vmul.f32 %v260, 0.5
        %v269 = vmul.f32 %v261, 0.5
        %v270 = vmul.f32 %v262, 0.5
        %v271 = vmul.f32 %v263, 0.5
        %v272 = vtanh.pop %v264
        %v273 = vtanh.pop %v265
        %v274 = vtanh.pop %v266
        %v275 = vtanh.pop %v267
        %v276 = vtanh.pop %v268
        %v277 = vtanh.pop %v269
        %v278 = vtanh.pop %v270
        %v279 = vtanh.pop %v271
        %v280 = vmul.f32 %v272, 0.5
        %v281 = vmul.f32 %v273, 0.5
        %v282 = vmul.f32 %v274, 0.5
        %v283 = vmul.f32 %v275, 0.5
        %v284 = vmul.f32 %v276, 0.5
        %v285 = vmul.f32 %v277, 0.5
        %v286 = vmul.f32 %v278, 0.5
        %v287 = vmul.f32 %v279, 0.5
        %v288 = vadd.f32 %v280, 0.5
        %v289 = vadd.f32 %v281, 0.5
        %v290 = vadd.f32 %v282, 0.5
        %v291 = vadd.f32 %v283, 0.5
        %v292 = vadd.f32 %v284, 0.5
        %v293 = vadd.f32 %v285, 0.5
        %v294 = vadd.f32 %v286, 0.5
        %v295 = vadd.f32 %v287, 0.5
        %296 = vst [vmem:[%s188] sm:$0xff] %v288
        %297 = vst [vmem:[%s188 + $0x8] sm:$0xff] %v289
        %298 = vst [vmem:[%s188 + $0x10] sm:$0xff] %v290
        %299 = vst [vmem:[%s188 + $0x18] sm:$0xff] %v291
        %300 = vst [vmem:[%s188 + $0x20] sm:$0xff] %v292
        %301 = vst [vmem:[%s188 + $0x28] sm:$0xff] %v293
        %302 = vst [vmem:[%s188 + $0x30] sm:$0xff] %v294
        %303 = vst [vmem:[%s188 + $0x38] sm:$0xff] %v295
        %s304 = sand.u32 %s96, 1
        %s305 = scalar_lea.sflag [#allocation4], %s304
        %s306 = sand.u32 %s96, 1
        %s307 = smul.addr %s306, 64
        %s308 = scalar_lea.vmem [#allocation5], %s307
        // Predicated region
        $region37: #{tpu_custom_call.1} parent=31 // pred_check
          %p309 = pneg %p106
        $region38: #{tpu_custom_call.1} parent=31 // pred_check_branch
          %311 = sbr.rel (%p309) target = $region40
        $region39: #{tpu_custom_call.1} parent=31 // pred_region
          %s313 = ssub.s32 1024, 1024
          %314 = vsyncadd %s305, %s313
          %s315 = smul.addr %s20, 8
          %s316 = smul.addr %s315, 128
          %s317 = scalar_lea.hbm %s3, %s316
          %s318 = sshll.u32 %s308, 4
          %s319 = int_to_ptr.vmem [resolvable:$true] %s318
          %324 = dma.vmem_to_hbm [thread:$0]  %s319, 1024, %s317, %s305, 256, 256, 16
        $region40: #{tpu_custom_call.1} parent=31 // pred_fallthru
          _
      $region32: #{tpu_custom_call.1} parent=5 // pred_fallthru
        _
      %p325 = scmp.le.s32.totalorder 2, %s15
      // Predicated region
      $region41: #{tpu_custom_call.1} parent=5 // pred_check
        %p326 = pneg %p325
      $region42: #{tpu_custom_call.1} parent=5 // pred_check_branch
        %328 = sbr.rel (%p326) target = $region44
      $region43: #{tpu_custom_call.1} parent=5 // pred_region
        %s329 = ssub.s32 %s15, 2
        // Predicated region
        $region45: #{tpu_custom_call.1} parent=43 // pred_check
          %p330 = pneg %p112
        $region46: #{tpu_custom_call.1} parent=43 // pred_check_branch
          %332 = sbr.rel (%p330) target = $region48
        $region47: #{tpu_custom_call.1} parent=43 // pred_region
          %s333 = sand.u32 %s97, 1
          %s334 = scalar_lea.sflag [#allocation4], %s333
          %s335 = sand.u32 %s97, 1
          %s336 = smul.addr %s335, 64
          %s337 = scalar_lea.vmem [#allocation5], %s336
          %338 = dma.done %s334, 1024
        $region48: #{tpu_custom_call.1} parent=43 // pred_fallthru
          _
      $region44: #{tpu_custom_call.1} parent=5 // pred_fallthru
        _
    $region6: #{tpu_custom_call.1} parent=1 // loop_footer
      %s19 = sadd.s32 1, %s15
    $region7: #{tpu_custom_call.1} parent=1 // loop_footer_branch
      %14 = sbr.rel target = $region3
    $region8: #{tpu_custom_call.1} parent=1 // loop_exit
      _
    %339 = vsyncpa [#allocation3], 1
    %s340 = scalar_lea.sflag [#allocation3], 1
    %341 = vsyncpa %s340, 1
    %342 = vsyncpa [#allocation4], 1
    %s343 = scalar_lea.sflag [#allocation4], 1
    %344 = vsyncpa %s343, 1

</llo_original>
